<compile_context>
chip_gen: v5e
topology: v5e:2x2
jax: 0.10.0
libtpu: 0.0.40
codegen_flags: <defaults>
</compile_context>

<pallas_src>
import functools

import jax
import jax.numpy as jnp
from jax.experimental import pallas as pl
from jax.experimental.pallas import tpu as pltpu

_MIB = 1024 * 1024


def _contrastive_kernel(xi_ref, xt_ref, out_ref, *, inv_temp: float, bt: int):
    """xi_ref/xt_ref: (bt, L, D) VMEM blocks; out_ref: (1, 1, bt) per-sample means."""
    lane = jax.lax.broadcasted_iota(jnp.int32, (1, bt), 1)

    def one_sample(i, means):
        xi = xi_ref[i].astype(jnp.float32)            # (L, D)
        xt = xt_ref[i].astype(jnp.float32)            # (L, D)
        # bf16 operands feed the MXU at native rate; accumulation stays f32.
        sim = jnp.einsum(
            "ld,kd->lk",
            xi.astype(jnp.bfloat16), xt.astype(jnp.bfloat16),
            preferred_element_type=jnp.float32,
        ) * inv_temp                                  # (L, L); scaled AFTER the matmul
        # positive pairs sim[i, i] kept in full f32 precision (row-wise dot)
        diag = jnp.sum(xi * xt, axis=-1, keepdims=True) * inv_temp       # (L, 1)
        # numerically stable log-sum-exp along the key axis
        m = jnp.max(sim, axis=-1, keepdims=True)                          # (L, 1)
        lse = m + jnp.log(jnp.sum(jnp.exp(sim - m), axis=-1, keepdims=True))
        # -log_softmax(sim)[i, i] = lse_i - sim[i, i]; reduce to a per-sample mean
        mean_i = jnp.mean(lse - diag)
        return means + jnp.where(lane == i, mean_i, 0.0)

    means0 = jnp.zeros((1, bt), jnp.float32)
    if bt <= 8:
        means = means0
        for i in range(bt):                    # static unroll for small blocks
            means = one_sample(i, means)
    else:
        means = jax.lax.fori_loop(0, bt, one_sample, means0, unroll=4)
    out_ref[0] = means


def _vmem_config():
    """Per-generation (vmem_limit_bytes, block_budget_bytes, min_grid_steps)."""
    try:
        cap = int(pltpu.get_tpu_info().vmem_capacity_bytes)
    except Exception:                 # unknown chip: be conservative (v7x-class)
        cap = 64 * _MIB
    if cap >= 96 * _MIB:
        # v5e / v6e: 128 MiB VMEM, single TensorCore per chip
        return 100 * _MIB, 64 * _MIB, 1
    # v7x-class: 64 MiB per TensorCore, 2 TensorCores -> keep >= 2 grid steps
    return 48 * _MIB, 24 * _MIB, 2


def _pick_block_batch(bs: int, L: int, D: int,
                      budget_bytes: int, min_grid_steps: int) -> int:
    """Largest batch-block that fits the per-grid-step VMEM budget."""
    # Live VMEM per grid step (f32 inputs, intra-kernel loop over the bt samples):
    #   per sample: 2 inputs x 2 pipeline buffers x (L*D) f32  (double-buffered DMA)
    #   fixed     : ~3 (L,L) f32 temporaries (sim, exp(sim-m), broadcast of m)
    #               + one bf16 (L,D) pair + one f32 (L,D) product for the diagonal
    per_sample = 2 * 2 * L * D * 4
    fixed = 3 * L * L * 4 + 2 * L * D * 2 + L * D * 4 + 16 * L * 4
    # TODO(synk): add a streaming (flash-style) log-sum-exp over key blocks for the
    # case where a single sample's (L,L) temporaries no longer fit (very large L on v7x).
    cap = max(1, (budget_bytes - fixed) // per_sample) if budget_bytes > fixed else 1
    divisors = [d for d in range(1, bs + 1) if bs % d == 0]
    fitting = [d for d in divisors if d <= cap] or [1]
    if min_grid_steps > 1:
        multi = [d for d in fitting if bs // d >= min_grid_steps]
        if multi:
            return max(multi)
    return max(fitting)


def contrastive_loss(Xi: jax.Array, Xt: jax.Array, temp: float = 0.07) -> jax.Array:
    assert Xi.shape == Xt.shape and Xi.ndim == 3
    bs, L, D = Xi.shape

    vmem_limit, block_budget, min_steps = _vmem_config()
    bt = _pick_block_batch(bs, L, D, block_budget, min_steps)
    grid = (bs // bt,)

    kernel = functools.partial(_contrastive_kernel, inv_temp=1.0 / temp, bt=bt)

    itemsize = jnp.dtype(Xi.dtype).itemsize
    cost = pl.CostEstimate(
        flops=2 * bs * L * L * D + 2 * bs * L * D,   # matmul + f32 diagonal row-dot
        transcendentals=bs * L * L,                  # exp over the similarity matrix
        bytes_accessed=2 * bs * L * D * itemsize + bs * 4,
    )

    per_sample = pl.pallas_call(
        kernel,
        out_shape=jax.ShapeDtypeStruct((bs // bt, 1, bt), jnp.float32),
        grid_spec=pltpu.PrefetchScalarGridSpec(
            num_scalar_prefetch=0,
            grid=grid,
            in_specs=[
                pl.BlockSpec((bt, L, D), lambda b: (b, 0, 0)),
                pl.BlockSpec((bt, L, D), lambda b: (b, 0, 0)),
            ],
            out_specs=pl.BlockSpec((1, 1, bt), lambda b: (b, 0, 0)),
        ),
        compiler_params=pltpu.CompilerParams(
            dimension_semantics=("parallel",),
            vmem_limit_bytes=vmem_limit,
        ),
        cost_estimate=cost,
    )(Xi, Xt)

    # per-sample means were computed in-kernel; the final scalar is a mean over bs
    return jnp.mean(per_sample)


def _reference_loss_f32(Xi, Xt, temp=0.07):
    # pure-JAX reference mirroring the PyTorch module (full f32 matmul)
    sim = jnp.einsum("bld,bkd->blk", Xi, Xt) / temp
    logsm = jax.nn.log_softmax(sim, axis=-1)
    eye = jnp.eye(sim.shape[-1], dtype=sim.dtype)[None]
    loss_pre_sample = -jnp.sum(logsm * eye, axis=-1).mean(-1)
    return loss_pre_sample.mean()


def _reference_loss_mixed(Xi, Xt, temp=0.07):
    # mirrors the kernel's arithmetic exactly: bf16 MXU sim with f32 accumulation,
    # f32 positives, 1/temp applied after the matmul
    inv_temp = 1.0 / temp
    sim = jnp.einsum("bld,bkd->blk",
                     Xi.astype(jnp.bfloat16), Xt.astype(jnp.bfloat16),
                     preferred_element_type=jnp.float32) * inv_temp
    diag = jnp.sum(Xi * Xt, axis=-1) * inv_temp
    m = jnp.max(sim, axis=-1)
    lse = m + jnp.log(jnp.sum(jnp.exp(sim - m[..., None]), axis=-1))
    return jnp.mean(lse - diag)


if __name__ == "__main__":
    key = jax.random.PRNGKey(0)
    k1, k2 = jax.random.split(key)

    bs, max_len, d_model = 2, 8, 32
    Xi = jax.random.normal(k1, (bs, max_len, d_model), dtype=jnp.float32)
    Xt = jax.random.normal(k2, (bs, max_len, d_model), dtype=jnp.float32)

    loss = contrastive_loss(Xi, Xt, temp=0.07)
    jax.block_until_ready(loss)

    # tight check vs. a reference using the same mixed precision as the kernel
    mixed = _reference_loss_mixed(Xi, Xt, temp=0.07)
    assert jnp.allclose(loss, mixed, rtol=1e-3, atol=1e-2), (loss, mixed)

    # loose check vs. the full-f32 PyTorch-equivalent reference (bf16 MXU rounding)
    ref = _reference_loss_f32(Xi, Xt, temp=0.07)
    assert jnp.allclose(loss, ref, rtol=5e-2, atol=5e-1), (loss, ref)

    print("KERNEL_OK")
</pallas_src>

<mosaic_0001>
module attributes {stable_mosaic.version = 11 : i64} {
  func.func @_contrastive_kernel(%arg0: i32, %arg1: memref<1x8x32xf32, #tpu.memory_space<vmem>>, %arg2: memref<1x8x32xf32, #tpu.memory_space<vmem>>, %arg3: memref<1x1x1xf32, #tpu.memory_space<vmem>>) attributes {dimension_semantics = [#tpu.dimension_semantics<parallel>], iteration_bounds = array<i64: 2>, scalar_prefetch = 0 : i64, scratch_operands = 0 : i64, tpu.core_type = #tpu.core_type<tc>, window_params = [{transform_indices = @transform_0, window_bounds = array<i64: 1, 8, 32>}, {transform_indices = @transform_1, window_bounds = array<i64: 1, 8, 32>}, {transform_indices = @transform_2, window_bounds = array<i64: 1, 1, 1>}]} {
    %0 = tpu.iota {dimensions = array<i32: 1>} : vector<1x1xi32>
    %cst = arith.constant 0.000000e+00 : f32
    %1 = vector.broadcast %cst : f32 to vector<1x1xf32>
    %c0 = arith.constant 0 : index
    %c0_0 = arith.constant 0 : index
    %c0_1 = arith.constant 0 : index
    %2 = vector.load %arg1[%c0, %c0_0, %c0_1] : memref<1x8x32xf32, #tpu.memory_space<vmem>>, vector<1x8x32xf32>
    %3 = vector.shape_cast %2 : vector<1x8x32xf32> to vector<8x32xf32>
    %c0_2 = arith.constant 0 : index
    %c0_3 = arith.constant 0 : index
    %c0_4 = arith.constant 0 : index
    %4 = vector.load %arg2[%c0_2, %c0_3, %c0_4] : memref<1x8x32xf32, #tpu.memory_space<vmem>>, vector<1x8x32xf32>
    %5 = vector.shape_cast %4 : vector<1x8x32xf32> to vector<8x32xf32>
    %6 = arith.truncf %3 : vector<8x32xf32> to vector<8x32xbf16>
    %7 = arith.truncf %5 : vector<8x32xf32> to vector<8x32xbf16>
    "tpu.trace_start"() <{level = 10 : i32, message = "ld,kd->lk"}> : () -> ()
    %cst_5 = arith.constant dense<0.000000e+00> : vector<8x8xf32>
    %8 = tpu.matmul %6, %7, %cst_5 {dimension_numbers = #tpu.dot_dimension_numbers<[1], [1], [0], [0], [0, 0, 1, 0], [], []>} : vector<8x32xbf16>, vector<8x32xbf16>, vector<8x8xf32> -> vector<8x8xf32>
    "tpu.trace_stop"() : () -> ()
    %cst_6 = arith.constant 14.2857141 : f32
    %9 = vector.broadcast %cst_6 : f32 to vector<8x8xf32>
    %10 = arith.mulf %8, %9 : vector<8x8xf32>
    %11 = arith.mulf %3, %5 : vector<8x32xf32>
    %cst_7 = arith.constant dense<0.000000e+00> : vector<8xf32>
    %12 = vector.multi_reduction <add>, %11, %cst_7 [1] : vector<8x32xf32> to vector<8xf32>
    %13 = vector.shape_cast %12 : vector<8xf32> to vector<8x1xf32>
    %cst_8 = arith.constant 14.2857141 : f32
    %14 = vector.broadcast %cst_8 : f32 to vector<8x1xf32>
    %15 = arith.mulf %13, %14 : vector<8x1xf32>
    %cst_9 = arith.constant dense<0xFF800000> : vector<8xf32>
    %16 = vector.multi_reduction <maximumf>, %10, %cst_9 [1] : vector<8x8xf32> to vector<8xf32>
    %17 = vector.shape_cast %16 : vector<8xf32> to vector<8x1xf32>
    %18 = vector.broadcast %17 : vector<8x1xf32> to vector<8x8xf32>
    %19 = arith.subf %10, %18 : vector<8x8xf32>
    %20 = math.exp %19 : vector<8x8xf32>
    %cst_10 = arith.constant dense<0.000000e+00> : vector<8xf32>
    %21 = vector.multi_reduction <add>, %20, %cst_10 [1] : vector<8x8xf32> to vector<8xf32>
    %22 = vector.shape_cast %21 : vector<8xf32> to vector<8x1xf32>
    %23 = math.log %22 : vector<8x1xf32>
    %24 = arith.addf %17, %23 : vector<8x1xf32>
    %25 = arith.subf %24, %15 : vector<8x1xf32>
    %26 = vector.shape_cast %25 : vector<8x1xf32> to vector<1x8x1xf32>
    %cst_11 = arith.constant dense<0.000000e+00> : vector<1xf32>
    %27 = vector.multi_reduction <add>, %26, %cst_11 [1, 2] : vector<1x8x1xf32> to vector<1xf32>
    %28 = vector.shape_cast %27 : vector<1xf32> to vector<1x1x1xf32>
    %29 = vector.extract %28[0, 0, 0] : f32 from vector<1x1x1xf32>
    %cst_12 = arith.constant 8.000000e+00 : f32
    %30 = arith.divf %29, %cst_12 : f32
    %c0_i32 = arith.constant 0 : i32
    %31 = vector.broadcast %c0_i32 : i32 to vector<1x1xi32>
    %32 = arith.cmpi eq, %0, %31 : vector<1x1xi32>
    %cst_13 = arith.constant 0.000000e+00 : f32
    %33 = vector.broadcast %30 : f32 to vector<1x1xf32>
    %34 = vector.broadcast %cst_13 : f32 to vector<1x1xf32>
    %35 = arith.select %32, %33, %34 : vector<1x1xi1>, vector<1x1xf32>
    %36 = arith.addf %1, %35 : vector<1x1xf32>
    %c0_14 = arith.constant 0 : index
    %c0_15 = arith.constant 0 : index
    %c0_16 = arith.constant 0 : index
    %37 = vector.load %arg3[%c0_14, %c0_15, %c0_16] : memref<1x1x1xf32, #tpu.memory_space<vmem>>, vector<1x1x1xf32>
    %38 = vector.shape_cast %37 : vector<1x1x1xf32> to vector<1x1xf32>
    %39 = vector.shape_cast %36 : vector<1x1xf32> to vector<1x1x1xf32>
    tpu.vector_store %arg3[%c0_14, %c0_15, %c0_16], %39 {strides = array<i32>} : memref<1x1x1xf32, #tpu.memory_space<vmem>>, vector<1x1x1xf32>,
    return
  }
  func.func @transform_0(%arg0: i32) -> (i32, i32, i32) {
    %c0_i32 = arith.constant 0 : i32
    %c0_i32_0 = arith.constant 0 : i32
    %c0_i32_1 = arith.constant 0 : i32
    return %arg0, %c0_i32, %c0_i32_0 : i32, i32, i32
  }
  func.func @transform_1(%arg0: i32) -> (i32, i32, i32) {
    %c0_i32 = arith.constant 0 : i32
    %c0_i32_0 = arith.constant 0 : i32
    %c0_i32_1 = arith.constant 0 : i32
    return %arg0, %c0_i32, %c0_i32_0 : i32, i32, i32
  }
  func.func @transform_2(%arg0: i32) -> (i32, i32, i32) {
    %c0_i32 = arith.constant 0 : i32
    %c0_i32_0 = arith.constant 0 : i32
    %c0_i32_1 = arith.constant 0 : i32
    return %arg0, %c0_i32, %c0_i32_0 : i32, i32, i32
  }
}

</mosaic_0001>

<llo_original>
// kernel: tpu_custom_call.1
$region0: #{tpu_custom_call.1}
  #allocation0 [shape = 'u32[]', space=smem, size = 0x4, offset = 0x4, fixed_abs, tag = 'smem constant byte address 0x4 - core index']
  #allocation1 [shape = 'u32[72,128]{1,0:T(1,128)}', space=vmem, size = 0x9000, scoped, tag = 'internal scratch']
  %s0 = inlined_call_operand.hbm [shape: f32[2,8,32], index: 0, kind: input, shape index: {}]
  %s1 = inlined_call_operand.hbm [shape: f32[2,8,32], index: 1, kind: input, shape index: {}]
  %s2 = inlined_call_operand.vmem [shape: f32[2,1,1], index: 2, kind: output, shape index: {}]
  %s3 = sld [smem:[#allocation0]]
  $region49: #{tpu_custom_call.1} parent=0
    _
  %s5 = ssub.s32 1, %s3
  %s6 = scalar_select 0, %s5, %s3
  $region1: #{tpu_custom_call.1} parent=0
    #allocation2 [shape = 'u8[8192]{0}', space=vmem, size = 0x2000, scoped, tag = 'input window, operand 0']
    #allocation3 [shape = 's32[2]{0}', space=sflag, size = 0x8, scoped, tag = 'scoped memory for tpu_custom_call.1']
    #allocation4 [shape = 'u8[8192]{0}', space=vmem, size = 0x2000, scoped, tag = 'input window, operand 1']
    #allocation5 [shape = 's32[2]{0}', space=sflag, size = 0x8, scoped, tag = 'scoped memory for tpu_custom_call.1']
    %7 = vsyncpa [#allocation3], 0
    %s8 = scalar_lea.sflag [#allocation3], 1
    %9 = vsyncpa %s8, 0
    %10 = vsyncpa [#allocation5], 0
    %s11 = scalar_lea.sflag [#allocation5], 1
    %12 = vsyncpa %s11, 0
    loop: start=0, step=1, limit=4
    $region2: #{tpu_custom_call.1} parent=1 // loop_pre_header
      _
    $region3: #{tpu_custom_call.1} parent=1 // loop_header
      %s14 = sphi 0, %s18
      %p15 = scmp.ge.s32.totalorder %s14, 4
      %s24 = sphi 0, %s26
      %s27 = sphi 0, %s24
      %s28 = sphi 0, %s27
      %s44 = sphi 0, %s28
      %s50 = sphi 0, %s52
      %s53 = sphi 0, %s50
      %s54 = sphi 0, %s53
      %s70 = sphi 0, %s54
      %s76 = sphi 0, %s78
      %s79 = sphi 0, %s76
      %s80 = sphi 0, %s79
      %s96 = sphi 0, %s80
    $region4: #{tpu_custom_call.1} parent=1 // loop_header_branch
      %17 = sbr.rel (%p15) target = $region8
    $region5: #{tpu_custom_call.1} parent=1 // loop_body
      %s19 = ssub.s32 %s14, 1
      %s20 = ssub.s32 %s14, 2
      %s21 = sadd.s32 %s14, 1
      %s22 = ssub.s32 %s14, %s21
      %p23 = scmp.eq.s32.totalorder %s22, 0
      %s25 = sadd.s32 %s24, 1
      %s26 = scalar_select %p23, %s24, %s25
      %p29 = pneg %p23
      %p30 = scmp.eq.s32.totalorder %s14, 1
      %p31 = por %p29, %p30
      %p32 = scmp.ne.s32.totalorder %s24, %s27
      %p33 = scmp.eq.s32.totalorder %s14, 0
      %p34 = por %p32, %p33
      %p35 = scmp.ne.s32.totalorder %s24, %s27
      %p36 = scmp.eq.s32.totalorder %s19, 1
      %p37 = por %p35, %p36
      %p38 = scmp.ne.s32.totalorder %s27, %s28
      %p39 = scmp.eq.s32.totalorder %s19, 0
      %p40 = por %p38, %p39
      %p41 = scmp.ne.s32.totalorder %s27, %s28
      %p42 = scmp.eq.s32.totalorder %s20, 1
      %p43 = por %p41, %p42
      %p45 = scmp.ne.s32.totalorder %s28, %s44
      %p46 = scmp.eq.s32.totalorder %s20, 0
      %p47 = por %p45, %p46
      %s48 = ssub.s32 %s14, %s21
      %p49 = scmp.eq.s32.totalorder %s48, 0
      %s51 = sadd.s32 %s50, 1
      %s52 = scalar_select %p49, %s50, %s51
      %p55 = pneg %p49
      %p56 = scmp.eq.s32.totalorder %s14, 1
      %p57 = por %p55, %p56
      %p58 = scmp.ne.s32.totalorder %s50, %s53
      %p59 = scmp.eq.s32.totalorder %s14, 0
      %p60 = por %p58, %p59
      %p61 = scmp.ne.s32.totalorder %s50, %s53
      %p62 = scmp.eq.s32.totalorder %s19, 1
      %p63 = por %p61, %p62
      %p64 = scmp.ne.s32.totalorder %s53, %s54
      %p65 = scmp.eq.s32.totalorder %s19, 0
      %p66 = por %p64, %p65
      %p67 = scmp.ne.s32.totalorder %s53, %s54
      %p68 = scmp.eq.s32.totalorder %s20, 1
      %p69 = por %p67, %p68
      %p71 = scmp.ne.s32.totalorder %s54, %s70
      %p72 = scmp.eq.s32.totalorder %s20, 0
      %p73 = por %p71, %p72
      %s74 = ssub.s32 %s14, %s21
      %p75 = scmp.eq.s32.totalorder %s74, 0
      %s77 = sadd.s32 %s76, 1
      %s78 = scalar_select %p75, %s76, %s77
      %p81 = pneg %p75
      %p82 = scmp.eq.s32.totalorder %s14, 1
      %p83 = por %p81, %p82
      %p84 = scmp.ne.s32.totalorder %s76, %s79
      %p85 = scmp.eq.s32.totalorder %s14, 0
      %p86 = por %p84, %p85
      %p87 = scmp.ne.s32.totalorder %s76, %s79
      %p88 = scmp.eq.s32.totalorder %s19, 1
      %p89 = por %p87, %p88
      %p90 = scmp.ne.s32.totalorder %s79, %s80
      %p91 = scmp.eq.s32.totalorder %s19, 0
      %p92 = por %p90, %p91
      %p93 = scmp.ne.s32.totalorder %s79, %s80
      %p94 = scmp.eq.s32.totalorder %s20, 1
      %p95 = por %p93, %p94
      %p97 = scmp.ne.s32.totalorder %s80, %s96
      %p98 = scmp.eq.s32.totalorder %s20, 0
      %p99 = por %p97, %p98
      %p100 = scmp.le.s32.totalorder 1, %s14
      %p101 = scmp.lt.s32.totalorder %s14, 3
      %p102 = pnand %p100, %p101
      %p103 = pneg %p102
      // Predicated region
      $region9: #{tpu_custom_call.1} parent=5 // pred_check
        _
      $region10: #{tpu_custom_call.1} parent=5 // pred_check_branch
        %105 = sbr.rel (%p102) target = $region12
      $region11: #{tpu_custom_call.1} parent=5 // pred_region
        %s106 = ssub.s32 %s14, 1
      $region12: #{tpu_custom_call.1} parent=5 // pred_fallthru
        _
      %p107 = scmp.lt.s32.totalorder %s14, 2
      // Predicated region
      $region13: #{tpu_custom_call.1} parent=5 // pred_check
        %p108 = pneg %p107
      $region14: #{tpu_custom_call.1} parent=5 // pred_check_branch
        %110 = sbr.rel (%p108) target = $region16
      $region15: #{tpu_custom_call.1} parent=5 // pred_region
        // Predicated region
        $region17: #{tpu_custom_call.1} parent=15 // pred_check
          %p111 = pneg %p34
        $region18: #{tpu_custom_call.1} parent=15 // pred_check_branch
          %113 = sbr.rel (%p111) target = $region20
        $region19: #{tpu_custom_call.1} parent=15 // pred_region
          %s114 = sand.u32 %s24, 1
          %s115 = scalar_lea.sflag [#allocation3], %s114
          %s116 = sand.u32 %s24, 1
          %s117 = smul.addr %s116, 8
          %s118 = scalar_lea.vmem [#allocation2], %s117
          %120 = vsyncadd %s115, 0
          %s121 = smul.addr %s14, 8
          %s122 = scalar_lea.hbm %s0, %s121
          %s124 = sshll.u32 %s122, 4
          %s125 = int_to_ptr.hbm [resolvable:$true] %s124
          %s126 = sshll.u32 %s118, 4
          %s127 = int_to_ptr.vmem [resolvable:$true] %s126
          %129 = dma.hbm_to_vmem [thread:$0]  %s125, 128, %s127, %s115
        $region20: #{tpu_custom_call.1} parent=15 // pred_fallthru
          _
        // Predicated region
        $region21: #{tpu_custom_call.1} parent=15 // pred_check
          %p130 = pneg %p60
        $region22: #{tpu_custom_call.1} parent=15 // pred_check_branch
          %132 = sbr.rel (%p130) target = $region24
        $region23: #{tpu_custom_call.1} parent=15 // pred_region
          %s133 = sand.u32 %s50, 1
          %s134 = scalar_lea.sflag [#allocation5], %s133
          %s135 = sand.u32 %s50, 1
          %s136 = smul.addr %s135, 8
          %s137 = scalar_lea.vmem [#allocation4], %s136
          %139 = vsyncadd %s134, 0
          %s140 = smul.addr %s14, 8
          %s141 = scalar_lea.hbm %s1, %s140
          %s143 = sshll.u32 %s141, 4
          %s144 = int_to_ptr.hbm [resolvable:$true] %s143
          %s145 = sshll.u32 %s137, 4
          %s146 = int_to_ptr.vmem [resolvable:$true] %s145
          %148 = dma.hbm_to_vmem [thread:$0]  %s144, 128, %s146, %s134
        $region24: #{tpu_custom_call.1} parent=15 // pred_fallthru
          _
      $region16: #{tpu_custom_call.1} parent=5 // pred_fallthru
        _
      %p149 = scmp.le.s32.totalorder 1, %s14
      %p150 = scmp.lt.s32.totalorder %s14, 3
      %p151 = pnand %p149, %p150
      %p152 = pneg %p151
      // Predicated region
      $region25: #{tpu_custom_call.1} parent=5 // pred_check
        _
      $region26: #{tpu_custom_call.1} parent=5 // pred_check_branch
        %154 = sbr.rel (%p151) target = $region28
      $region27: #{tpu_custom_call.1} parent=5 // pred_region
        %s155 = ssub.s32 %s14, 1
        %s156 = sand.u32 %s27, 1
        %s157 = scalar_lea.sflag [#allocation3], %s156
        %s158 = sand.u32 %s27, 1
        %s159 = smul.addr %s158, 8
        %s160 = scalar_lea.vmem [#allocation2], %s159
        // Predicated region
        $region29: #{tpu_custom_call.1} parent=27 // pred_check
          %p161 = pneg %p40
        $region30: #{tpu_custom_call.1} parent=27 // pred_check_branch
          %163 = sbr.rel (%p161) target = $region32
        $region31: #{tpu_custom_call.1} parent=27 // pred_region
          %165 = dma.done %s157, 128
        $region32: #{tpu_custom_call.1} parent=27 // pred_fallthru
          _
        %s166 = sand.u32 %s53, 1
        %s167 = scalar_lea.sflag [#allocation5], %s166
        %s168 = sand.u32 %s53, 1
        %s169 = smul.addr %s168, 8
        %s170 = scalar_lea.vmem [#allocation4], %s169
        // Predicated region
        $region33: #{tpu_custom_call.1} parent=27 // pred_check
          %p171 = pneg %p66
        $region34: #{tpu_custom_call.1} parent=27 // pred_check_branch
          %173 = sbr.rel (%p171) target = $region36
        $region35: #{tpu_custom_call.1} parent=27 // pred_region
          %175 = dma.done %s167, 128
        $region36: #{tpu_custom_call.1} parent=27 // pred_fallthru
          _
        %s176 = sand.u32 %s27, 1
        %s177 = scalar_lea.sflag [#allocation3], %s176
        %s178 = sand.u32 %s27, 1
        %s179 = smul.addr %s178, 8
        %s180 = scalar_lea.vmem [#allocation2], %s179
        %p181 = pneg %p40
        %p182 = pneg %p37
        %s183 = sand.u32 %s53, 1
        %s184 = scalar_lea.sflag [#allocation5], %s183
        %s185 = sand.u32 %s53, 1
        %s186 = smul.addr %s185, 8
        %s187 = scalar_lea.vmem [#allocation4], %s186
        %p188 = pneg %p66
        %p189 = pneg %p63
        %p190 = pneg %p92
        %p191 = pneg %p89
        %p192 = scmp.lt.s32.totalorder %s19, 1
        %s193 = scalar_select %p192, %s19, 1
        %s194 = scalar_lea.vmem %s2, %s193
        %p195 = scmp.lt.s32.totalorder %s19, 1
        %s196 = scalar_select %p195, %s19, 1
        %s197 = scalar_lea.vmem %s2, %s196
        %v199 = vlaneseq
        %v200 = vand.u32 %v199, 127
        %v201 = vld [vmem:[%s160] sm:$0xff]
        %v202 = vld [vmem:[%s170] sm:$0xff]
        %v203 = vpack.c.bf16 %v201, %v201
        %v204 = vpack.c.bf16 %v202, %v202
        %vm205 = vcmask 261120
        %v207 = vsel %vm205, %v203, 0
        %v210 = vsel %vm205, %v204, 0
        %212 = vmatpush.bf16.xpose.msra.mxu0 0
        %213 = vmatpush.bf16.xpose.msra.mxu0 0
        %214 = vmatpush.bf16.xpose.msra.mxu0 0
        %215 = vmatpush.bf16.xpose.msra.mxu0 0
        %216 = vmatpush.bf16.xpose.msra.mxu0 0
        %217 = vmatpush.bf16.xpose.msra.mxu0 0
        %218 = vmatpush.bf16.xpose.msra.mxu0 0
        %219 = vmatpush.bf16.xpose.msra.mxu0 %v210
        %220 = vmatmul.bf16.gmra.mxu0 %v207
        %v221 = vpop.f32.mrf.mxu0
        %v222 = vadd.f32 0.0, %v221
        %v223 = vpop.f32.mrf.mxu0
        %224 = vdwg.mxu0
        %v225 = vmul.f32 %v222, 14.285714
        %v226 = vmul.f32 %v201, %v202
        %v227 = vsel %vm205, %v226, 0.0
        %228 = vadd.xlane.f32.xlu0 %v227
        %v229 = vpop.xlane.xlu0 %228
        %v230 = vmul.f32 %v229, 14.285714
        %vm231 = vcmask 64512
        %v232 = vsel %vm231, %v225, -inf
        %233 = vmax.xlane.f32.xlu0 %v232
        %v234 = vpop.xlane.xlu0 %233
        %v235 = vsub.f32 %v225, %v234
        %v236 = vmul.f32 %v235, 1.442695
        %v237 = vpow.pop %v236
        %v238 = vsel %vm231, %v237, 0.0
        %239 = vadd.xlane.f32.xlu0 %v238
        %v240 = vpop.xlane.xlu0 %239
        %v241 = vlog2.pop %v240
        %v242 = vmul.f32 %v241, 0.6931472
        %v243 = vadd.f32 %v234, %v242
        %v244 = vsub.f32 %v243, %v230
        %vm245 = vcmask 7168
        %v246 = vsel %vm245, %v244, 0.0
        %247 = vadd.xlane.f32.xlu0 %v246
        %v248 = vpop.xlane.xlu0 %247
        %v249 = vrot.slane %v248, 4
        %v250 = vadd.f32 %v248, %v249
        %v251 = vrot.slane %v250, 2
        %v252 = vadd.f32 %v250, %v251
        %v253 = vrot.slane %v252, 1
        %v254 = vadd.f32 %v252, %v253
        %s255 = vtos %v254
        %v256 = vrcp.pop 8.0
        %v257 = vmul.f32 8.0, %v256
        %v258 = vsub.f32 1.0, %v257
        %v259 = vmul.f32 %v256, %v258
        %v260 = vadd.f32 %v256, %v259
        %vm261 = vweird.f32 %v256
        %v262 = vsel %vm261, %v256, %v260
        %s263 = vtos %v262
        %s264 = smul.f32 %s255, %s263
        %vm265 = vcmp.eq.s32.totalorder %v200, 0
        %v266 = vstv %s264
        %v267 = vsel %vm265, %v266, 0.0
        %v268 = vadd.f32 %v267, 0.0
        %vm269 = vcmask 0
        %270 = vst.msk [vmem:[%s197] sm:$0x1] %vm269, %v268
        %p271 = scmp.lt.s32.totalorder %s19, 1
        %s272 = scalar_select %p271, %s19, 1
        %s273 = scalar_lea.vmem %s2, %s272
        // Predicated region
        $region37: #{tpu_custom_call.1} parent=27 // pred_check
          %p274 = pneg %p89
        $region38: #{tpu_custom_call.1} parent=27 // pred_check_branch
          %276 = sbr.rel (%p274) target = $region40
        $region39: #{tpu_custom_call.1} parent=27 // pred_region
          _
        $region40: #{tpu_custom_call.1} parent=27 // pred_fallthru
          _
      $region28: #{tpu_custom_call.1} parent=5 // pred_fallthru
        _
      %p277 = scmp.le.s32.totalorder 2, %s14
      // Predicated region
      $region41: #{tpu_custom_call.1} parent=5 // pred_check
        %p278 = pneg %p277
      $region42: #{tpu_custom_call.1} parent=5 // pred_check_branch
        %280 = sbr.rel (%p278) target = $region44
      $region43: #{tpu_custom_call.1} parent=5 // pred_region
        %s281 = ssub.s32 %s14, 2
        // Predicated region
        $region45: #{tpu_custom_call.1} parent=43 // pred_check
          %p282 = pneg %p95
        $region46: #{tpu_custom_call.1} parent=43 // pred_check_branch
          %284 = sbr.rel (%p282) target = $region48
        $region47: #{tpu_custom_call.1} parent=43 // pred_region
          %p285 = scmp.lt.s32.totalorder %s20, 1
          %s286 = scalar_select %p285, %s20, 1
          %s287 = scalar_lea.vmem %s2, %s286
        $region48: #{tpu_custom_call.1} parent=43 // pred_fallthru
          _
      $region44: #{tpu_custom_call.1} parent=5 // pred_fallthru
        _
    $region6: #{tpu_custom_call.1} parent=1 // loop_footer
      %s18 = sadd.s32 1, %s14
    $region7: #{tpu_custom_call.1} parent=1 // loop_footer_branch
      %13 = sbr.rel target = $region3
    $region8: #{tpu_custom_call.1} parent=1 // loop_exit
      _
    %288 = vsyncpa [#allocation3], 1
    %s289 = scalar_lea.sflag [#allocation3], 1
    %290 = vsyncpa %s289, 1
    %291 = vsyncpa [#allocation5], 1
    %s292 = scalar_lea.sflag [#allocation5], 1
    %293 = vsyncpa %s292, 1

</llo_original>
